<compile_context>
chip_gen: v6e
topology: v6e:2x2x1
jax: 0.10.0
libtpu: 0.0.40
codegen_flags: <defaults>
</compile_context>

<pallas_src>
import numpy as np
import jax
import jax.numpy as jnp
from jax.experimental import pallas as pl
from jax.experimental.pallas import tpu as pltpu


def _filter_taps(f, normalize, flip):
    """1-D separable taps (python floats) and the single output scale."""
    f1 = np.asarray(f, dtype=np.float64).reshape(-1)
    if flip:
        f1 = f1[::-1]
    k2d_sum = float(np.outer(f1, f1).sum())
    scale = (1.0 / k2d_sum) if normalize else 1.0
    return [float(v) for v in f1], scale


def _pick_channel_tile(B, per_channel_bytes, budget_bytes=12 * 1024 * 1024):
    """Channel tile that divides B: prefer lane-dense multiples of 128 under the
    VMEM budget, and (if possible) leave >=2 grid steps so v7x's two TensorCores
    both get work.  Falls back to the full channel extent for small/awkward B
    (the last block dim must be a multiple of 128 or the full array extent)."""
    limit = max(1, budget_bytes // max(per_channel_bytes, 1))
    lane_dense = [t for t in range(128, B + 1, 128) if B % t == 0 and t <= limit]
    if lane_dense:
        multi_step = [t for t in lane_dense if B // t >= 2]
        return max(multi_step) if multi_step else max(lane_dense)
    return B


def _blur_kernel(taps, scale, H, W, H_out, W_out, Hp, WpL, L, pad, stride, TC):
    k = len(taps)
    c0 = L - pad  # scratch column holding (virtual) input column -pad

    def wmul(w, v):
        if w == 1.0:
            return v
        if w == 2.0:
            return v + v            # multiply-free for the 1-2-1 taps
        return v * jnp.float32(w)

    def kernel(x_ref, o_ref, xp_ref):
        # ---- build the zero-padded plane in VMEM (no host-side jnp.pad) ------
        # Border zeroing is O(pad*(H+W)*TC) per step and is redone every step so
        # it stays correct when the parallel grid axis is split across cores.
        if pad > 0:
            xp_ref[:, 0:L, :] = jnp.zeros((Hp, L, TC), jnp.float32)
            r0 = ((L + W) // 8) * 8           # aligned start; any overlap with the
            xp_ref[:, r0:WpL, :] = jnp.zeros((Hp, WpL - r0, TC), jnp.float32)
            xp_ref[0:pad, :, :] = jnp.zeros((pad, WpL, TC), jnp.float32)
            xp_ref[Hp - pad:Hp, :, :] = jnp.zeros((pad, WpL, TC), jnp.float32)
        # Interior copy: row offset `pad` is on the major axis, column offset L is
        # a multiple of 8 -> aligned stores; overwrites anything zeroed above.
        xp_ref[pad:pad + H, L:L + W, :] = x_ref[...].astype(jnp.float32)

        if stride == 1:
            # Separable two-pass blur: horizontal taps = sublane-axis slices,
            # vertical taps = major-axis slices; channels stay on the lanes.
            h = None
            for dx in range(k):
                col = wmul(taps[dx], xp_ref[:, c0 + dx:c0 + dx + W_out, :])
                h = col if h is None else h + col
            acc = None
            for dy in range(k):
                row = wmul(taps[dy], h[dy:dy + H_out])
                acc = row if acc is None else acc + row
        else:
            # stride > 1: compute only the kept outputs by reading strided
            # rows/cols (both non-lane axes) straight from the padded scratch.
            acc = None
            for dy in range(k):
                for dx in range(k):
                    tap = xp_ref[pl.ds(dy, H_out, stride=stride),
                                 pl.ds(c0 + dx, W_out, stride=stride), :]
                    tap = wmul(taps[dy] * taps[dx], tap)
                    acc = tap if acc is None else acc + tap

        if scale != 1.0:
            acc = acc * jnp.float32(scale)      # single 1/16 scale at the end
        o_ref[...] = acc.astype(o_ref.dtype)

    return kernel


def blur2d(x, f=(1, 2, 1), normalize=True, flip=False, stride=1):
    """Pallas TPU implementation of Blur2d.forward for NCHW input x."""
    if f is None:
        return x
    taps, scale = _filter_taps(f, normalize, flip)
    k = len(taps)
    pad = (k - 1) // 2                       # matches int((f.size(2) - 1) / 2)
    N, C, H, W = x.shape
    B = N * C

    H_out = (H + 2 * pad - k) // stride + 1
    W_out = (W + 2 * pad - k) // stride + 1
    Hp = H + 2 * pad
    L = ((pad + 7) // 8) * 8 if pad > 0 else 0   # left halo rounded to sublane tile
    WpL = L + W + pad

    itemsize = x.dtype.itemsize
    per_channel = (2 * H * W * itemsize            # double-buffered input block
                   + 2 * H_out * W_out * itemsize  # double-buffered output block
                   + Hp * WpL * 4                  # padded f32 scratch plane
                   + Hp * W_out * 4)               # horizontal-pass intermediate
    TC = _pick_channel_tile(B, per_channel)

    kernel = _blur_kernel(taps, scale, H, W, H_out, W_out, Hp, WpL, L, pad,
                          stride, TC)

    # Layout plumbing only: channels-last so N*C rides the lane axis in-kernel.
    xl = jnp.transpose(x, (2, 3, 0, 1)).reshape(H, W, B)

    out = pl.pallas_call(
        kernel,
        out_shape=jax.ShapeDtypeStruct((H_out, W_out, B), x.dtype),
        grid=(B // TC,),
        in_specs=[pl.BlockSpec((H, W, TC), lambda i: (0, 0, i))],
        out_specs=pl.BlockSpec((H_out, W_out, TC), lambda i: (0, 0, i)),
        scratch_shapes=[pltpu.VMEM((Hp, WpL, TC), jnp.float32)],
        compiler_params=pltpu.CompilerParams(
            dimension_semantics=("parallel",),
            vmem_limit_bytes=32 * 1024 * 1024),
    )(xl)

    return jnp.transpose(out.reshape(H_out, W_out, N, C), (2, 3, 0, 1))


def _reference_blur2d(x, f=(1, 2, 1), normalize=True, flip=False, stride=1):
    """Pure-JAX reference (lax depthwise conv) for correctness checking."""
    if f is None:
        return x
    f1 = np.asarray(f, dtype=np.float32)
    k2 = f1[:, None] * f1[None, :]
    if normalize:
        k2 = k2 / k2.sum()
    if flip:
        k2 = k2[::-1, ::-1]
    C = x.shape[1]
    kh = k2.shape[0]
    pad = (kh - 1) // 2
    rhs = jnp.broadcast_to(jnp.asarray(k2)[None, None], (C, 1, kh, kh)).astype(jnp.float32)
    out = jax.lax.conv_general_dilated(
        x.astype(jnp.float32), rhs,
        window_strides=(stride, stride),
        padding=((pad, pad), (pad, pad)),
        dimension_numbers=("NCHW", "OIHW", "NCHW"),
        feature_group_count=C,
        precision=jax.lax.Precision.HIGHEST)
    return out.astype(x.dtype)


if __name__ == "__main__":
    key = jax.random.PRNGKey(0)
    x = jax.random.normal(key, (2, 4, 16, 16), dtype=jnp.float32)

    out = blur2d(x, f=(1, 2, 1), normalize=True, flip=False, stride=1)
    out = jax.block_until_ready(out)

    ref = _reference_blur2d(x, f=(1, 2, 1), normalize=True, flip=False, stride=1)
    assert out.shape == ref.shape, (out.shape, ref.shape)
    np.testing.assert_allclose(np.asarray(out), np.asarray(ref), rtol=1e-5, atol=1e-5)

    print("KERNEL_OK")
</pallas_src>

<mosaic_0001>
module attributes {stable_mosaic.version = 11 : i64} {
  func.func @kernel(%arg0: i32, %arg1: memref<16x16x8xf32, #tpu.memory_space<vmem>>, %arg2: memref<16x16x8xf32, #tpu.memory_space<vmem>>, %arg3: memref<18x25x8xf32, #tpu.memory_space<vmem>>) attributes {dimension_semantics = [#tpu.dimension_semantics<parallel>], iteration_bounds = array<i64: 1>, scalar_prefetch = 0 : i64, scratch_operands = 1 : i64, tpu.core_type = #tpu.core_type<tc>, window_params = [{transform_indices = @transform_0, window_bounds = array<i64: 16, 16, 8>}, {transform_indices = @transform_1, window_bounds = array<i64: 16, 16, 8>}]} {
    %cst = arith.constant 0.000000e+00 : f32
    %0 = vector.broadcast %cst : f32 to vector<18x8x8xf32>
    %c0 = arith.constant 0 : index
    %c0_0 = arith.constant 0 : index
    %c0_1 = arith.constant 0 : index
    %1 = vector.load %arg3[%c0, %c0_0, %c0_1] : memref<18x25x8xf32, #tpu.memory_space<vmem>>, vector<18x8x8xf32>
    tpu.vector_store %arg3[%c0, %c0_0, %c0_1], %0 {strides = array<i32>} : memref<18x25x8xf32, #tpu.memory_space<vmem>>, vector<18x8x8xf32>,
    %cst_2 = arith.constant 0.000000e+00 : f32
    %2 = vector.broadcast %cst_2 : f32 to vector<18x1x8xf32>
    %c0_3 = arith.constant 0 : index
    %c24 = arith.constant 24 : index
    %c0_4 = arith.constant 0 : index
    %3 = vector.load %arg3[%c0_3, %c24, %c0_4] : memref<18x25x8xf32, #tpu.memory_space<vmem>>, vector<18x1x8xf32>
    tpu.vector_store %arg3[%c0_3, %c24, %c0_4], %2 {strides = array<i32>} : memref<18x25x8xf32, #tpu.memory_space<vmem>>, vector<18x1x8xf32>,
    %cst_5 = arith.constant 0.000000e+00 : f32
    %4 = vector.broadcast %cst_5 : f32 to vector<1x25x8xf32>
    %c0_6 = arith.constant 0 : index
    %c0_7 = arith.constant 0 : index
    %c0_8 = arith.constant 0 : index
    %5 = vector.load %arg3[%c0_6, %c0_7, %c0_8] : memref<18x25x8xf32, #tpu.memory_space<vmem>>, vector<1x25x8xf32>
    tpu.vector_store %arg3[%c0_6, %c0_7, %c0_8], %4 {strides = array<i32>} : memref<18x25x8xf32, #tpu.memory_space<vmem>>, vector<1x25x8xf32>,
    %cst_9 = arith.constant 0.000000e+00 : f32
    %6 = vector.broadcast %cst_9 : f32 to vector<1x25x8xf32>
    %c17 = arith.constant 17 : index
    %c0_10 = arith.constant 0 : index
    %c0_11 = arith.constant 0 : index
    %7 = vector.load %arg3[%c17, %c0_10, %c0_11] : memref<18x25x8xf32, #tpu.memory_space<vmem>>, vector<1x25x8xf32>
    tpu.vector_store %arg3[%c17, %c0_10, %c0_11], %6 {strides = array<i32>} : memref<18x25x8xf32, #tpu.memory_space<vmem>>, vector<1x25x8xf32>,
    %c0_12 = arith.constant 0 : index
    %c0_13 = arith.constant 0 : index
    %c0_14 = arith.constant 0 : index
    %8 = vector.load %arg1[%c0_12, %c0_13, %c0_14] : memref<16x16x8xf32, #tpu.memory_space<vmem>>, vector<16x16x8xf32>
    %c1 = arith.constant 1 : index
    %c8 = arith.constant 8 : index
    %c0_15 = arith.constant 0 : index
    %9 = vector.load %arg3[%c1, %c8, %c0_15] : memref<18x25x8xf32, #tpu.memory_space<vmem>>, vector<16x16x8xf32>
    tpu.vector_store %arg3[%c1, %c8, %c0_15], %8 {strides = array<i32>} : memref<18x25x8xf32, #tpu.memory_space<vmem>>, vector<16x16x8xf32>,
    %c0_16 = arith.constant 0 : index
    %c7 = arith.constant 7 : index
    %c0_17 = arith.constant 0 : index
    %10 = vector.load %arg3[%c0_16, %c7, %c0_17] : memref<18x25x8xf32, #tpu.memory_space<vmem>>, vector<18x16x8xf32>
    %c0_18 = arith.constant 0 : index
    %c8_19 = arith.constant 8 : index
    %c0_20 = arith.constant 0 : index
    %11 = vector.load %arg3[%c0_18, %c8_19, %c0_20] : memref<18x25x8xf32, #tpu.memory_space<vmem>>, vector<18x16x8xf32>
    %12 = arith.addf %11, %11 : vector<18x16x8xf32>
    %13 = arith.addf %10, %12 : vector<18x16x8xf32>
    %c0_21 = arith.constant 0 : index
    %c9 = arith.constant 9 : index
    %c0_22 = arith.constant 0 : index
    %14 = vector.load %arg3[%c0_21, %c9, %c0_22] : memref<18x25x8xf32, #tpu.memory_space<vmem>>, vector<18x16x8xf32>
    %15 = arith.addf %13, %14 : vector<18x16x8xf32>
    %16 = vector.extract_strided_slice %15 {offsets = [0, 0, 0], sizes = [16, 16, 8], strides = [1, 1, 1]} : vector<18x16x8xf32> to vector<16x16x8xf32>
    %17 = vector.extract_strided_slice %15 {offsets = [1, 0, 0], sizes = [16, 16, 8], strides = [1, 1, 1]} : vector<18x16x8xf32> to vector<16x16x8xf32>
    %18 = arith.addf %17, %17 : vector<16x16x8xf32>
    %19 = arith.addf %16, %18 : vector<16x16x8xf32>
    %20 = vector.extract_strided_slice %15 {offsets = [2, 0, 0], sizes = [16, 16, 8], strides = [1, 1, 1]} : vector<18x16x8xf32> to vector<16x16x8xf32>
    %21 = arith.addf %19, %20 : vector<16x16x8xf32>
    %cst_23 = arith.constant 6.250000e-02 : f32
    %22 = vector.broadcast %cst_23 : f32 to vector<16x16x8xf32>
    %23 = arith.mulf %21, %22 : vector<16x16x8xf32>
    %c0_24 = arith.constant 0 : index
    %c0_25 = arith.constant 0 : index
    %c0_26 = arith.constant 0 : index
    %24 = vector.load %arg2[%c0_24, %c0_25, %c0_26] : memref<16x16x8xf32, #tpu.memory_space<vmem>>, vector<16x16x8xf32>
    tpu.vector_store %arg2[%c0_24, %c0_25, %c0_26], %23 {strides = array<i32>} : memref<16x16x8xf32, #tpu.memory_space<vmem>>, vector<16x16x8xf32>,
    return
  }
  func.func @transform_0(%arg0: i32) -> (i32, i32, i32) {
    %c0_i32 = arith.constant 0 : i32
    %c0_i32_0 = arith.constant 0 : i32
    %c0_i32_1 = arith.constant 0 : i32
    return %c0_i32, %c0_i32_0, %arg0 : i32, i32, i32
  }
  func.func @transform_1(%arg0: i32) -> (i32, i32, i32) {
    %c0_i32 = arith.constant 0 : i32
    %c0_i32_0 = arith.constant 0 : i32
    %c0_i32_1 = arith.constant 0 : i32
    return %c0_i32, %c0_i32_0, %arg0 : i32, i32, i32
  }
}

</mosaic_0001>

<llo_original>
// kernel: tpu_custom_call.1
$region0: #{tpu_custom_call.1}
  #allocation0 [shape = 'u32[]', space=smem, size = 0x4, offset = 0x4, fixed_abs, tag = 'smem constant byte address 0x4 - core index']
  #allocation1 [shape = 'u32[144,128]{1,0:T(1,128)}', space=vmem, size = 0x12000, scoped, tag = 'internal scratch']
  #allocation2 [shape = 'f32[18,25,8]{2,1,0:T(8,128)}', space=vmem, size = 0x48000, scoped, tag = 'scratch operand']
  %s0 = inlined_call_operand.vmem [shape: f32[16,16,8], index: 0, kind: input, shape index: {}]
  %s1 = inlined_call_operand.vmem [shape: f32[16,16,8], index: 1, kind: output, shape index: {}]
  %s2 = sld [smem:[#allocation0]]
  $region14: #{tpu_custom_call.1} parent=0
    _
  %s4 = ssub.s32 1, %s2
  %s5 = scalar_select 0, %s4, %s2
  // Predicated region
  $region2: #{tpu_custom_call.1} parent=0 // pred_check
    _
  $region3: #{tpu_custom_call.1} parent=0 // pred_check_branch
    %7 = sbr.rel (0) target = $region5
  $region4: #{tpu_custom_call.1} parent=0 // pred_region
    _
  $region5: #{tpu_custom_call.1} parent=0 // pred_fallthru
    _
  %vm8 = vcmask 64512
  %9 = vst.msk [vmem:[#allocation2] sm:$0xff] %vm8, 0.0
  %10 = vst.msk [vmem:[#allocation2 + $0x20] sm:$0xff] %vm8, 0.0
  %11 = vst.msk [vmem:[#allocation2 + $0x40] sm:$0xff] %vm8, 0.0
  %12 = vst.msk [vmem:[#allocation2 + $0x60] sm:$0xff] %vm8, 0.0
  %13 = vst.msk [vmem:[#allocation2 + $0x80] sm:$0xff] %vm8, 0.0
  %14 = vst.msk [vmem:[#allocation2 + $0xa0] sm:$0xff] %vm8, 0.0
  %15 = vst.msk [vmem:[#allocation2 + $0xc0] sm:$0xff] %vm8, 0.0
  %16 = vst.msk [vmem:[#allocation2 + $0xe0] sm:$0xff] %vm8, 0.0
  %17 = vst.msk [vmem:[#allocation2 + $0x100] sm:$0xff] %vm8, 0.0
  %18 = vst.msk [vmem:[#allocation2 + $0x120] sm:$0xff] %vm8, 0.0
  %19 = vst.msk [vmem:[#allocation2 + $0x140] sm:$0xff] %vm8, 0.0
  %20 = vst.msk [vmem:[#allocation2 + $0x160] sm:$0xff] %vm8, 0.0
  %21 = vst.msk [vmem:[#allocation2 + $0x180] sm:$0xff] %vm8, 0.0
  %22 = vst.msk [vmem:[#allocation2 + $0x1a0] sm:$0xff] %vm8, 0.0
  %23 = vst.msk [vmem:[#allocation2 + $0x1c0] sm:$0xff] %vm8, 0.0
  %24 = vst.msk [vmem:[#allocation2 + $0x1e0] sm:$0xff] %vm8, 0.0
  %25 = vst.msk [vmem:[#allocation2 + $0x200] sm:$0xff] %vm8, 0.0
  %26 = vst.msk [vmem:[#allocation2 + $0x220] sm:$0xff] %vm8, 0.0
  %vm27 = vcmask 57344
  %28 = vst.msk [vmem:[#allocation2 + $0x18] sm:$0x1] %vm27, 0.0
  %29 = vst.msk [vmem:[#allocation2 + $0x38] sm:$0x1] %vm27, 0.0
  %30 = vst.msk [vmem:[#allocation2 + $0x58] sm:$0x1] %vm27, 0.0
  %31 = vst.msk [vmem:[#allocation2 + $0x78] sm:$0x1] %vm27, 0.0
  %32 = vst.msk [vmem:[#allocation2 + $0x98] sm:$0x1] %vm27, 0.0
  %33 = vst.msk [vmem:[#allocation2 + $0xb8] sm:$0x1] %vm27, 0.0
  %34 = vst.msk [vmem:[#allocation2 + $0xd8] sm:$0x1] %vm27, 0.0
  %35 = vst.msk [vmem:[#allocation2 + $0xf8] sm:$0x1] %vm27, 0.0
  %36 = vst.msk [vmem:[#allocation2 + $0x118] sm:$0x1] %vm27, 0.0
  %37 = vst.msk [vmem:[#allocation2 + $0x138] sm:$0x1] %vm27, 0.0
  %38 = vst.msk [vmem:[#allocation2 + $0x158] sm:$0x1] %vm27, 0.0
  %39 = vst.msk [vmem:[#allocation2 + $0x178] sm:$0x1] %vm27, 0.0
  %40 = vst.msk [vmem:[#allocation2 + $0x198] sm:$0x1] %vm27, 0.0
  %41 = vst.msk [vmem:[#allocation2 + $0x1b8] sm:$0x1] %vm27, 0.0
  %42 = vst.msk [vmem:[#allocation2 + $0x1d8] sm:$0x1] %vm27, 0.0
  %43 = vst.msk [vmem:[#allocation2 + $0x1f8] sm:$0x1] %vm27, 0.0
  %44 = vst.msk [vmem:[#allocation2 + $0x218] sm:$0x1] %vm27, 0.0
  %45 = vst.msk [vmem:[#allocation2 + $0x238] sm:$0x1] %vm27, 0.0
  %46 = vst.msk [vmem:[#allocation2] sm:$0xff] %vm8, 0.0
  %47 = vst.msk [vmem:[#allocation2 + $0x8] sm:$0xff] %vm8, 0.0
  %48 = vst.msk [vmem:[#allocation2 + $0x10] sm:$0xff] %vm8, 0.0
  %49 = vst.msk [vmem:[#allocation2 + $0x18] sm:$0x1] %vm27, 0.0
  %s50 = scalar_lea.vmem [#allocation2], 544
  %51 = vst.msk [vmem:[%s50] sm:$0xff] %vm8, 0.0
  %52 = vst.msk [vmem:[%s50 + $0x8] sm:$0xff] %vm8, 0.0
  %53 = vst.msk [vmem:[%s50 + $0x10] sm:$0xff] %vm8, 0.0
  %54 = vst.msk [vmem:[%s50 + $0x18] sm:$0x1] %vm27, 0.0
  %v55 = vld [vmem:[%s0] sm:$0xff]
  %v56 = vld [vmem:[%s0 + $0x8] sm:$0xff]
  %v57 = vld [vmem:[%s0 + $0x10] sm:$0xff]
  %v58 = vld [vmem:[%s0 + $0x18] sm:$0xff]
  %v59 = vld [vmem:[%s0 + $0x20] sm:$0xff]
  %v60 = vld [vmem:[%s0 + $0x28] sm:$0xff]
  %v61 = vld [vmem:[%s0 + $0x30] sm:$0xff]
  %v62 = vld [vmem:[%s0 + $0x38] sm:$0xff]
  %v63 = vld [vmem:[%s0 + $0x40] sm:$0xff]
  %v64 = vld [vmem:[%s0 + $0x48] sm:$0xff]
  %v65 = vld [vmem:[%s0 + $0x50] sm:$0xff]
  %v66 = vld [vmem:[%s0 + $0x58] sm:$0xff]
  %v67 = vld [vmem:[%s0 + $0x60] sm:$0xff]
  %v68 = vld [vmem:[%s0 + $0x68] sm:$0xff]
  %v69 = vld [vmem:[%s0 + $0x70] sm:$0xff]
  %v70 = vld [vmem:[%s0 + $0x78] sm:$0xff]
  %v71 = vld [vmem:[%s0 + $0x80] sm:$0xff]
  %v72 = vld [vmem:[%s0 + $0x88] sm:$0xff]
  %v73 = vld [vmem:[%s0 + $0x90] sm:$0xff]
  %v74 = vld [vmem:[%s0 + $0x98] sm:$0xff]
  %v75 = vld [vmem:[%s0 + $0xa0] sm:$0xff]
  %v76 = vld [vmem:[%s0 + $0xa8] sm:$0xff]
  %v77 = vld [vmem:[%s0 + $0xb0] sm:$0xff]
  %v78 = vld [vmem:[%s0 + $0xb8] sm:$0xff]
  %v79 = vld [vmem:[%s0 + $0xc0] sm:$0xff]
  %v80 = vld [vmem:[%s0 + $0xc8] sm:$0xff]
  %v81 = vld [vmem:[%s0 + $0xd0] sm:$0xff]
  %v82 = vld [vmem:[%s0 + $0xd8] sm:$0xff]
  %v83 = vld [vmem:[%s0 + $0xe0] sm:$0xff]
  %v84 = vld [vmem:[%s0 + $0xe8] sm:$0xff]
  %v85 = vld [vmem:[%s0 + $0xf0] sm:$0xff]
  %v86 = vld [vmem:[%s0 + $0xf8] sm:$0xff]
  %s87 = scalar_lea.vmem [#allocation2], 32
  %88 = vst.msk [vmem:[%s87 + $0x8] sm:$0xff] %vm8, %v55
  %89 = vst.msk [vmem:[%s87 + $0x10] sm:$0xff] %vm8, %v56
  %90 = vst.msk [vmem:[%s87 + $0x28] sm:$0xff] %vm8, %v57
  %91 = vst.msk [vmem:[%s87 + $0x30] sm:$0xff] %vm8, %v58
  %92 = vst.msk [vmem:[%s87 + $0x48] sm:$0xff] %vm8, %v59
  %93 = vst.msk [vmem:[%s87 + $0x50] sm:$0xff] %vm8, %v60
  %94 = vst.msk [vmem:[%s87 + $0x68] sm:$0xff] %vm8, %v61
  %95 = vst.msk [vmem:[%s87 + $0x70] sm:$0xff] %vm8, %v62
  %96 = vst.msk [vmem:[%s87 + $0x88] sm:$0xff] %vm8, %v63
  %97 = vst.msk [vmem:[%s87 + $0x90] sm:$0xff] %vm8, %v64
  %98 = vst.msk [vmem:[%s87 + $0xa8] sm:$0xff] %vm8, %v65
  %99 = vst.msk [vmem:[%s87 + $0xb0] sm:$0xff] %vm8, %v66
  %100 = vst.msk [vmem:[%s87 + $0xc8] sm:$0xff] %vm8, %v67
  %101 = vst.msk [vmem:[%s87 + $0xd0] sm:$0xff] %vm8, %v68
  %102 = vst.msk [vmem:[%s87 + $0xe8] sm:$0xff] %vm8, %v69
  %103 = vst.msk [vmem:[%s87 + $0xf0] sm:$0xff] %vm8, %v70
  %104 = vst.msk [vmem:[%s87 + $0x108] sm:$0xff] %vm8, %v71
  %105 = vst.msk [vmem:[%s87 + $0x110] sm:$0xff] %vm8, %v72
  %106 = vst.msk [vmem:[%s87 + $0x128] sm:$0xff] %vm8, %v73
  %107 = vst.msk [vmem:[%s87 + $0x130] sm:$0xff] %vm8, %v74
  %108 = vst.msk [vmem:[%s87 + $0x148] sm:$0xff] %vm8, %v75
  %109 = vst.msk [vmem:[%s87 + $0x150] sm:$0xff] %vm8, %v76
  %110 = vst.msk [vmem:[%s87 + $0x168] sm:$0xff] %vm8, %v77
  %111 = vst.msk [vmem:[%s87 + $0x170] sm:$0xff] %vm8, %v78
  %112 = vst.msk [vmem:[%s87 + $0x188] sm:$0xff] %vm8, %v79
  %113 = vst.msk [vmem:[%s87 + $0x190] sm:$0xff] %vm8, %v80
  %114 = vst.msk [vmem:[%s87 + $0x1a8] sm:$0xff] %vm8, %v81
  %115 = vst.msk [vmem:[%s87 + $0x1b0] sm:$0xff] %vm8, %v82
  %116 = vst.msk [vmem:[%s87 + $0x1c8] sm:$0xff] %vm8, %v83
  %117 = vst.msk [vmem:[%s87 + $0x1d0] sm:$0xff] %vm8, %v84
  %118 = vst.msk [vmem:[%s87 + $0x1e8] sm:$0xff] %vm8, %v85
  %119 = vst.msk [vmem:[%s87 + $0x1f0] sm:$0xff] %vm8, %v86
  %v120 = vld [vmem:[#allocation2 + $0x7] sm:$0xff]
  %v121 = vld [vmem:[#allocation2 + $0xf] sm:$0xff]
  %v122 = vld [vmem:[#allocation2 + $0x27] sm:$0xff]
  %v123 = vld [vmem:[#allocation2 + $0x2f] sm:$0xff]
  %v124 = vld [vmem:[#allocation2 + $0x47] sm:$0xff]
  %v125 = vld [vmem:[#allocation2 + $0x4f] sm:$0xff]
  %v126 = vld [vmem:[#allocation2 + $0x67] sm:$0xff]
  %v127 = vld [vmem:[#allocation2 + $0x6f] sm:$0xff]
  %v128 = vld [vmem:[#allocation2 + $0x87] sm:$0xff]
  %v129 = vld [vmem:[#allocation2 + $0x8f] sm:$0xff]
  %v130 = vld [vmem:[#allocation2 + $0xa7] sm:$0xff]
  %v131 = vld [vmem:[#allocation2 + $0xaf] sm:$0xff]
  %v132 = vld [vmem:[#allocation2 + $0xc7] sm:$0xff]
  %v133 = vld [vmem:[#allocation2 + $0xcf] sm:$0xff]
  %v134 = vld [vmem:[#allocation2 + $0xe7] sm:$0xff]
  %v135 = vld [vmem:[#allocation2 + $0xef] sm:$0xff]
  %v136 = vld [vmem:[#allocation2 + $0x107] sm:$0xff]
  %v137 = vld [vmem:[#allocation2 + $0x10f] sm:$0xff]
  %v138 = vld [vmem:[#allocation2 + $0x127] sm:$0xff]
  %v139 = vld [vmem:[#allocation2 + $0x12f] sm:$0xff]
  %v140 = vld [vmem:[#allocation2 + $0x147] sm:$0xff]
  %v141 = vld [vmem:[#allocation2 + $0x14f] sm:$0xff]
  %v142 = vld [vmem:[#allocation2 + $0x167] sm:$0xff]
  %v143 = vld [vmem:[#allocation2 + $0x16f] sm:$0xff]
  %v144 = vld [vmem:[#allocation2 + $0x187] sm:$0xff]
  %v145 = vld [vmem:[#allocation2 + $0x18f] sm:$0xff]
  %v146 = vld [vmem:[#allocation2 + $0x1a7] sm:$0xff]
  %v147 = vld [vmem:[#allocation2 + $0x1af] sm:$0xff]
  %v148 = vld [vmem:[#allocation2 + $0x1c7] sm:$0xff]
  %v149 = vld [vmem:[#allocation2 + $0x1cf] sm:$0xff]
  %v150 = vld [vmem:[#allocation2 + $0x1e7] sm:$0xff]
  %v151 = vld [vmem:[#allocation2 + $0x1ef] sm:$0xff]
  %v152 = vld [vmem:[#allocation2 + $0x207] sm:$0xff]
  %v153 = vld [vmem:[#allocation2 + $0x20f] sm:$0xff]
  %v154 = vld [vmem:[#allocation2 + $0x227] sm:$0xff]
  %v155 = vld [vmem:[#allocation2 + $0x22f] sm:$0xff]
  %v156 = vld [vmem:[#allocation2 + $0x8] sm:$0xff]
  %v157 = vld [vmem:[#allocation2 + $0x10] sm:$0xff]
  %v158 = vld [vmem:[#allocation2 + $0x28] sm:$0xff]
  %v159 = vld [vmem:[#allocation2 + $0x30] sm:$0xff]
  %v160 = vld [vmem:[#allocation2 + $0x48] sm:$0xff]
  %v161 = vld [vmem:[#allocation2 + $0x50] sm:$0xff]
  %v162 = vld [vmem:[#allocation2 + $0x68] sm:$0xff]
  %v163 = vld [vmem:[#allocation2 + $0x70] sm:$0xff]
  %v164 = vld [vmem:[#allocation2 + $0x88] sm:$0xff]
  %v165 = vld [vmem:[#allocation2 + $0x90] sm:$0xff]
  %v166 = vld [vmem:[#allocation2 + $0xa8] sm:$0xff]
  %v167 = vld [vmem:[#allocation2 + $0xb0] sm:$0xff]
  %v168 = vld [vmem:[#allocation2 + $0xc8] sm:$0xff]
  %v169 = vld [vmem:[#allocation2 + $0xd0] sm:$0xff]
  %v170 = vld [vmem:[#allocation2 + $0xe8] sm:$0xff]
  %v171 = vld [vmem:[#allocation2 + $0xf0] sm:$0xff]
  %v172 = vld [vmem:[#allocation2 + $0x108] sm:$0xff]
  %v173 = vld [vmem:[#allocation2 + $0x110] sm:$0xff]
  %v174 = vld [vmem:[#allocation2 + $0x128] sm:$0xff]
  %v175 = vld [vmem:[#allocation2 + $0x130] sm:$0xff]
  %v176 = vld [vmem:[#allocation2 + $0x148] sm:$0xff]
  %v177 = vld [vmem:[#allocation2 + $0x150] sm:$0xff]
  %v178 = vld [vmem:[#allocation2 + $0x168] sm:$0xff]
  %v179 = vld [vmem:[#allocation2 + $0x170] sm:$0xff]
  %v180 = vld [vmem:[#allocation2 + $0x188] sm:$0xff]
  %v181 = vld [vmem:[#allocation2 + $0x190] sm:$0xff]
  %v182 = vld [vmem:[#allocation2 + $0x1a8] sm:$0xff]
  %v183 = vld [vmem:[#allocation2 + $0x1b0] sm:$0xff]
  %v184 = vld [vmem:[#allocation2 + $0x1c8] sm:$0xff]
  %v185 = vld [vmem:[#allocation2 + $0x1d0] sm:$0xff]
  %v186 = vld [vmem:[#allocation2 + $0x1e8] sm:$0xff]
  %v187 = vld [vmem:[#allocation2 + $0x1f0] sm:$0xff]
  %v188 = vld [vmem:[#allocation2 + $0x208] sm:$0xff]
  %v189 = vld [vmem:[#allocation2 + $0x210] sm:$0xff]
  %v190 = vld [vmem:[#allocation2 + $0x228] sm:$0xff]
  %v191 = vld [vmem:[#allocation2 + $0x230] sm:$0xff]
  %v192 = vadd.f32 %v156, %v156
  %v193 = vadd.f32 %v157, %v157
  %v194 = vadd.f32 %v158, %v158
  %v195 = vadd.f32 %v159, %v159
  %v196 = vadd.f32 %v160, %v160
  %v197 = vadd.f32 %v161, %v161
  %v198 = vadd.f32 %v162, %v162
  %v199 = vadd.f32 %v163, %v163
  %v200 = vadd.f32 %v164, %v164
  %v201 = vadd.f32 %v165, %v165
  %v202 = vadd.f32 %v166, %v166
  %v203 = vadd.f32 %v167, %v167
  %v204 = vadd.f32 %v168, %v168
  %v205 = vadd.f32 %v169, %v169
  %v206 = vadd.f32 %v170, %v170
  %v207 = vadd.f32 %v171, %v171
  %v208 = vadd.f32 %v172, %v172
  %v209 = vadd.f32 %v173, %v173
  %v210 = vadd.f32 %v174, %v174
  %v211 = vadd.f32 %v175, %v175
  %v212 = vadd.f32 %v176, %v176
  %v213 = vadd.f32 %v177, %v177
  %v214 = vadd.f32 %v178, %v178
  %v215 = vadd.f32 %v179, %v179
  %v216 = vadd.f32 %v180, %v180
  %v217 = vadd.f32 %v181, %v181
  %v218 = vadd.f32 %v182, %v182
  %v219 = vadd.f32 %v183, %v183
  %v220 = vadd.f32 %v184, %v184
  %v221 = vadd.f32 %v185, %v185
  %v222 = vadd.f32 %v186, %v186
  %v223 = vadd.f32 %v187, %v187
  %v224 = vadd.f32 %v188, %v188
  %v225 = vadd.f32 %v189, %v189
  %v226 = vadd.f32 %v190, %v190
  %v227 = vadd.f32 %v191, %v191
  %v228 = vadd.f32 %v120, %v192
  %v229 = vadd.f32 %v121, %v193
  %v230 = vadd.f32 %v122, %v194
  %v231 = vadd.f32 %v123, %v195
  %v232 = vadd.f32 %v124, %v196
  %v233 = vadd.f32 %v125, %v197
  %v234 = vadd.f32 %v126, %v198
  %v235 = vadd.f32 %v127, %v199
  %v236 = vadd.f32 %v128, %v200
  %v237 = vadd.f32 %v129, %v201
  %v238 = vadd.f32 %v130, %v202
  %v239 = vadd.f32 %v131, %v203
  %v240 = vadd.f32 %v132, %v204
  %v241 = vadd.f32 %v133, %v205
  %v242 = vadd.f32 %v134, %v206
  %v243 = vadd.f32 %v135, %v207
  %v244 = vadd.f32 %v136, %v208
  %v245 = vadd.f32 %v137, %v209
  %v246 = vadd.f32 %v138, %v210
  %v247 = vadd.f32 %v139, %v211
  %v248 = vadd.f32 %v140, %v212
  %v249 = vadd.f32 %v141, %v213
  %v250 = vadd.f32 %v142, %v214
  %v251 = vadd.f32 %v143, %v215
  %v252 = vadd.f32 %v144, %v216
  %v253 = vadd.f32 %v145, %v217
  %v254 = vadd.f32 %v146, %v218
  %v255 = vadd.f32 %v147, %v219
  %v256 = vadd.f32 %v148, %v220
  %v257 = vadd.f32 %v149, %v221
  %v258 = vadd.f32 %v150, %v222
  %v259 = vadd.f32 %v151, %v223
  %v260 = vadd.f32 %v152, %v224
  %v261 = vadd.f32 %v153, %v225
  %v262 = vadd.f32 %v154, %v226
  %v263 = vadd.f32 %v155, %v227
  %v264 = vld [vmem:[#allocation2 + $0x9] sm:$0xff]
  %v265 = vld [vmem:[#allocation2 + $0x11] sm:$0xff]
  %v266 = vld [vmem:[#allocation2 + $0x29] sm:$0xff]
  %v267 = vld [vmem:[#allocation2 + $0x31] sm:$0xff]
  %v268 = vld [vmem:[#allocation2 + $0x49] sm:$0xff]
  %v269 = vld [vmem:[#allocation2 + $0x51] sm:$0xff]
  %v270 = vld [vmem:[#allocation2 + $0x69] sm:$0xff]
  %v271 = vld [vmem:[#allocation2 + $0x71] sm:$0xff]
  %v272 = vld [vmem:[#allocation2 + $0x89] sm:$0xff]
  %v273 = vld [vmem:[#allocation2 + $0x91] sm:$0xff]
  %v274 = vld [vmem:[#allocation2 + $0xa9] sm:$0xff]
  %v275 = vld [vmem:[#allocation2 + $0xb1] sm:$0xff]
  %v276 = vld [vmem:[#allocation2 + $0xc9] sm:$0xff]
  %v277 = vld [vmem:[#allocation2 + $0xd1] sm:$0xff]
  %v278 = vld [vmem:[#allocation2 + $0xe9] sm:$0xff]
  %v279 = vld [vmem:[#allocation2 + $0xf1] sm:$0xff]
  %v280 = vld [vmem:[#allocation2 + $0x109] sm:$0xff]
  %v281 = vld [vmem:[#allocation2 + $0x111] sm:$0xff]
  %v282 = vld [vmem:[#allocation2 + $0x129] sm:$0xff]
  %v283 = vld [vmem:[#allocation2 + $0x131] sm:$0xff]
  %v284 = vld [vmem:[#allocation2 + $0x149] sm:$0xff]
  %v285 = vld [vmem:[#allocation2 + $0x151] sm:$0xff]
  %v286 = vld [vmem:[#allocation2 + $0x169] sm:$0xff]
  %v287 = vld [vmem:[#allocation2 + $0x171] sm:$0xff]
  %v288 = vld [vmem:[#allocation2 + $0x189] sm:$0xff]
  %v289 = vld [vmem:[#allocation2 + $0x191] sm:$0xff]
  %v290 = vld [vmem:[#allocation2 + $0x1a9] sm:$0xff]
  %v291 = vld [vmem:[#allocation2 + $0x1b1] sm:$0xff]
  %v292 = vld [vmem:[#allocation2 + $0x1c9] sm:$0xff]
  %v293 = vld [vmem:[#allocation2 + $0x1d1] sm:$0xff]
  %v294 = vld [vmem:[#allocation2 + $0x1e9] sm:$0xff]
  %v295 = vld [vmem:[#allocation2 + $0x1f1] sm:$0xff]
  %v296 = vld [vmem:[#allocation2 + $0x209] sm:$0xff]
  %v297 = vld [vmem:[#allocation2 + $0x211] sm:$0xff]
  %v298 = vld [vmem:[#allocation2 + $0x229] sm:$0xff]
  %v299 = vld [vmem:[#allocation2 + $0x231] sm:$0xff]
  %v300 = vadd.f32 %v228, %v264
  %v301 = vadd.f32 %v229, %v265
  %v302 = vadd.f32 %v230, %v266
  %v303 = vadd.f32 %v231, %v267
  %v304 = vadd.f32 %v232, %v268
  %v305 = vadd.f32 %v233, %v269
  %v306 = vadd.f32 %v234, %v270
  %v307 = vadd.f32 %v235, %v271
  %v308 = vadd.f32 %v236, %v272
  %v309 = vadd.f32 %v237, %v273
  %v310 = vadd.f32 %v238, %v274
  %v311 = vadd.f32 %v239, %v275
  %v312 = vadd.f32 %v240, %v276
  %v313 = vadd.f32 %v241, %v277
  %v314 = vadd.f32 %v242, %v278
  %v315 = vadd.f32 %v243, %v279
  %v316 = vadd.f32 %v244, %v280
  %v317 = vadd.f32 %v245, %v281
  %v318 = vadd.f32 %v246, %v282
  %v319 = vadd.f32 %v247, %v283
  %v320 = vadd.f32 %v248, %v284
  %v321 = vadd.f32 %v249, %v285
  %v322 = vadd.f32 %v250, %v286
  %v323 = vadd.f32 %v251, %v287
  %v324 = vadd.f32 %v252, %v288
  %v325 = vadd.f32 %v253, %v289
  %v326 = vadd.f32 %v254, %v290
  %v327 = vadd.f32 %v255, %v291
  %v328 = vadd.f32 %v256, %v292
  %v329 = vadd.f32 %v257, %v293
  %v330 = vadd.f32 %v258, %v294
  %v331 = vadd.f32 %v259, %v295
  %v332 = vadd.f32 %v260, %v296
  %v333 = vadd.f32 %v261, %v297
  %v334 = vadd.f32 %v262, %v298
  %v335 = vadd.f32 %v263, %v299
  %v336 = vadd.f32 %v302, %v302
  %v337 = vadd.f32 %v303, %v303
  %v338 = vadd.f32 %v304, %v304
  %v339 = vadd.f32 %v305, %v305
  %v340 = vadd.f32 %v306, %v306
  %v341 = vadd.f32 %v307, %v307
  %v342 = vadd.f32 %v308, %v308
  %v343 = vadd.f32 %v309, %v309
  %v344 = vadd.f32 %v310, %v310
  %v345 = vadd.f32 %v311, %v311
  %v346 = vadd.f32 %v312, %v312
  %v347 = vadd.f32 %v313, %v313
  %v348 = vadd.f32 %v314, %v314
  %v349 = vadd.f32 %v315, %v315
  %v350 = vadd.f32 %v316, %v316
  %v351 = vadd.f32 %v317, %v317
  %v352 = vadd.f32 %v318, %v318
  %v353 = vadd.f32 %v319, %v319
  %v354 = vadd.f32 %v320, %v320
  %v355 = vadd.f32 %v321, %v321
  %v356 = vadd.f32 %v322, %v322
  %v357 = vadd.f32 %v323, %v323
  %v358 = vadd.f32 %v324, %v324
  %v359 = vadd.f32 %v325, %v325
  %v360 = vadd.f32 %v326, %v326
  %v361 = vadd.f32 %v327, %v327
  %v362 = vadd.f32 %v328, %v328
  %v363 = vadd.f32 %v329, %v329
  %v364 = vadd.f32 %v330, %v330
  %v365 = vadd.f32 %v331, %v331
  %v366 = vadd.f32 %v332, %v332
  %v367 = vadd.f32 %v333, %v333
  %v368 = vadd.f32 %v300, %v336
  %v369 = vadd.f32 %v301, %v337
  %v370 = vadd.f32 %v302, %v338
  %v371 = vadd.f32 %v303, %v339
  %v372 = vadd.f32 %v304, %v340
  %v373 = vadd.f32 %v305, %v341
  %v374 = vadd.f32 %v306, %v342
  %v375 = vadd.f32 %v307, %v343
  %v376 = vadd.f32 %v308, %v344
  %v377 = vadd.f32 %v309, %v345
  %v378 = vadd.f32 %v310, %v346
  %v379 = vadd.f32 %v311, %v347
  %v380 = vadd.f32 %v312, %v348
  %v381 = vadd.f32 %v313, %v349
  %v382 = vadd.f32 %v314, %v350
  %v383 = vadd.f32 %v315, %v351
  %v384 = vadd.f32 %v316, %v352
  %v385 = vadd.f32 %v317, %v353
  %v386 = vadd.f32 %v318, %v354
  %v387 = vadd.f32 %v319, %v355
  %v388 = vadd.f32 %v320, %v356
  %v389 = vadd.f32 %v321, %v357
  %v390 = vadd.f32 %v322, %v358
  %v391 = vadd.f32 %v323, %v359
  %v392 = vadd.f32 %v324, %v360
  %v393 = vadd.f32 %v325, %v361
  %v394 = vadd.f32 %v326, %v362
  %v395 = vadd.f32 %v327, %v363
  %v396 = vadd.f32 %v328, %v364
  %v397 = vadd.f32 %v329, %v365
  %v398 = vadd.f32 %v330, %v366
  %v399 = vadd.f32 %v331, %v367
  %v400 = vadd.f32 %v368, %v304
  %v401 = vadd.f32 %v369, %v305
  %v402 = vadd.f32 %v370, %v306
  %v403 = vadd.f32 %v371, %v307
  %v404 = vadd.f32 %v372, %v308
  %v405 = vadd.f32 %v373, %v309
  %v406 = vadd.f32 %v374, %v310
  %v407 = vadd.f32 %v375, %v311
  %v408 = vadd.f32 %v376, %v312
  %v409 = vadd.f32 %v377, %v313
  %v410 = vadd.f32 %v378, %v314
  %v411 = vadd.f32 %v379, %v315
  %v412 = vadd.f32 %v380, %v316
  %v413 = vadd.f32 %v381, %v317
  %v414 = vadd.f32 %v382, %v318
  %v415 = vadd.f32 %v383, %v319
  %v416 = vadd.f32 %v384, %v320
  %v417 = vadd.f32 %v385, %v321
  %v418 = vadd.f32 %v386, %v322
  %v419 = vadd.f32 %v387, %v323
  %v420 = vadd.f32 %v388, %v324
  %v421 = vadd.f32 %v389, %v325
  %v422 = vadd.f32 %v390, %v326
  %v423 = vadd.f32 %v391, %v327
  %v424 = vadd.f32 %v392, %v328
  %v425 = vadd.f32 %v393, %v329
  %v426 = vadd.f32 %v394, %v330
  %v427 = vadd.f32 %v395, %v331
  %v428 = vadd.f32 %v396, %v332
  %v429 = vadd.f32 %v397, %v333
  %v430 = vadd.f32 %v398, %v334
  %v431 = vadd.f32 %v399, %v335
  %v432 = vmul.f32 %v400, 0.0625
  %v433 = vmul.f32 %v401, 0.0625
  %v434 = vmul.f32 %v402, 0.0625
  %v435 = vmul.f32 %v403, 0.0625
  %v436 = vmul.f32 %v404, 0.0625
  %v437 = vmul.f32 %v405, 0.0625
  %v438 = vmul.f32 %v406, 0.0625
  %v439 = vmul.f32 %v407, 0.0625
  %v440 = vmul.f32 %v408, 0.0625
  %v441 = vmul.f32 %v409, 0.0625
  %v442 = vmul.f32 %v410, 0.0625
  %v443 = vmul.f32 %v411, 0.0625
  %v444 = vmul.f32 %v412, 0.0625
  %v445 = vmul.f32 %v413, 0.0625
  %v446 = vmul.f32 %v414, 0.0625
  %v447 = vmul.f32 %v415, 0.0625
  %v448 = vmul.f32 %v416, 0.0625
  %v449 = vmul.f32 %v417, 0.0625
  %v450 = vmul.f32 %v418, 0.0625
  %v451 = vmul.f32 %v419, 0.0625
  %v452 = vmul.f32 %v420, 0.0625
  %v453 = vmul.f32 %v421, 0.0625
  %v454 = vmul.f32 %v422, 0.0625
  %v455 = vmul.f32 %v423, 0.0625
  %v456 = vmul.f32 %v424, 0.0625
  %v457 = vmul.f32 %v425, 0.0625
  %v458 = vmul.f32 %v426, 0.0625
  %v459 = vmul.f32 %v427, 0.0625
  %v460 = vmul.f32 %v428, 0.0625
  %v461 = vmul.f32 %v429, 0.0625
  %v462 = vmul.f32 %v430, 0.0625
  %v463 = vmul.f32 %v431, 0.0625
  %464 = vst.msk [vmem:[%s1] sm:$0xff] %vm8, %v432
  %465 = vst.msk [vmem:[%s1 + $0x8] sm:$0xff] %vm8, %v433
  %466 = vst.msk [vmem:[%s1 + $0x10] sm:$0xff] %vm8, %v434
  %467 = vst.msk [vmem:[%s1 + $0x18] sm:$0xff] %vm8, %v435
  %468 = vst.msk [vmem:[%s1 + $0x20] sm:$0xff] %vm8, %v436
  %469 = vst.msk [vmem:[%s1 + $0x28] sm:$0xff] %vm8, %v437
  %470 = vst.msk [vmem:[%s1 + $0x30] sm:$0xff] %vm8, %v438
  %471 = vst.msk [vmem:[%s1 + $0x38] sm:$0xff] %vm8, %v439
  %472 = vst.msk [vmem:[%s1 + $0x40] sm:$0xff] %vm8, %v440
  %473 = vst.msk [vmem:[%s1 + $0x48] sm:$0xff] %vm8, %v441
  %474 = vst.msk [vmem:[%s1 + $0x50] sm:$0xff] %vm8, %v442
  %475 = vst.msk [vmem:[%s1 + $0x58] sm:$0xff] %vm8, %v443
  %476 = vst.msk [vmem:[%s1 + $0x60] sm:$0xff] %vm8, %v444
  %477 = vst.msk [vmem:[%s1 + $0x68] sm:$0xff] %vm8, %v445
  %478 = vst.msk [vmem:[%s1 + $0x70] sm:$0xff] %vm8, %v446
  %479 = vst.msk [vmem:[%s1 + $0x78] sm:$0xff] %vm8, %v447
  %480 = vst.msk [vmem:[%s1 + $0x80] sm:$0xff] %vm8, %v448
  %481 = vst.msk [vmem:[%s1 + $0x88] sm:$0xff] %vm8, %v449
  %482 = vst.msk [vmem:[%s1 + $0x90] sm:$0xff] %vm8, %v450
  %483 = vst.msk [vmem:[%s1 + $0x98] sm:$0xff] %vm8, %v451
  %484 = vst.msk [vmem:[%s1 + $0xa0] sm:$0xff] %vm8, %v452
  %485 = vst.msk [vmem:[%s1 + $0xa8] sm:$0xff] %vm8, %v453
  %486 = vst.msk [vmem:[%s1 + $0xb0] sm:$0xff] %vm8, %v454
  %487 = vst.msk [vmem:[%s1 + $0xb8] sm:$0xff] %vm8, %v455
  %488 = vst.msk [vmem:[%s1 + $0xc0] sm:$0xff] %vm8, %v456
  %489 = vst.msk [vmem:[%s1 + $0xc8] sm:$0xff] %vm8, %v457
  %490 = vst.msk [vmem:[%s1 + $0xd0] sm:$0xff] %vm8, %v458
  %491 = vst.msk [vmem:[%s1 + $0xd8] sm:$0xff] %vm8, %v459
  %492 = vst.msk [vmem:[%s1 + $0xe0] sm:$0xff] %vm8, %v460
  %493 = vst.msk [vmem:[%s1 + $0xe8] sm:$0xff] %vm8, %v461
  %494 = vst.msk [vmem:[%s1 + $0xf0] sm:$0xff] %vm8, %v462
  %495 = vst.msk [vmem:[%s1 + $0xf8] sm:$0xff] %vm8, %v463
  // Predicated region
  $region6: #{tpu_custom_call.1} parent=0 // pred_check
    _
  $region7: #{tpu_custom_call.1} parent=0 // pred_check_branch
    %497 = sbr.rel (0) target = $region9
  $region8: #{tpu_custom_call.1} parent=0 // pred_region
    _
  $region9: #{tpu_custom_call.1} parent=0 // pred_fallthru
    _
  // Predicated region
  $region10: #{tpu_custom_call.1} parent=0 // pred_check
    _
  $region11: #{tpu_custom_call.1} parent=0 // pred_check_branch
    %499 = sbr.rel (0) target = $region13
  $region12: #{tpu_custom_call.1} parent=0 // pred_region
    _
  $region13: #{tpu_custom_call.1} parent=0 // pred_fallthru
    _

</llo_original>
